<compile_context>
chip_gen: v7x
topology: tpu7x:2x2x1
jax: 0.10.0
libtpu: 0.0.40
codegen_flags: <defaults>
</compile_context>

<pallas_src>
import functools
import math

import jax
import jax.numpy as jnp
from jax.experimental import pallas as pl
from jax.experimental.pallas import tpu as pltpu


def _round_up(x, m):
    return (x + m - 1) // m * m


def _vmem_capacity_bytes():
    try:
        return int(pltpu.get_tpu_info().vmem_capacity_bytes)
    except Exception:
        return 64 << 20  # conservative default: v7x per-TensorCore VMEM


def _supports_bf16_vpu():
    # v6e/v7x have native bf16 VPU/EUP; v5e and older (or unknown) -> use f32.
    try:
        name = str(getattr(pltpu.get_tpu_info(), "chip_version", "")).lower()
    except Exception:
        return False
    if not name:
        return False
    return not any(g in name for g in ("v2", "v3", "v4", "v5"))


def _kan_kernel(x_ref, w_ref, o_ref, *, k, matmul_dtype, compute_dtype):
    """Fused KANLinear forward tile.

    x_ref: (TB, K)      input dtype
    w_ref: (2K, N_eff)  [W1^T ; W2^T], matmul dtype, VMEM-resident
    o_ref: (TB, N_eff)  output dtype
    """
    x = x_ref[...].astype(compute_dtype)
    # SiLU(x) = x * sigmoid(x) = 0.5*x*(1 + tanh(0.5*x)): single EUP op/elem.
    silu = (0.5 * x) * (1.0 + jnp.tanh(0.5 * x))
    lrelu = jnp.where(x >= 0, x, 0.01 * x)  # LeakyReLU, negative_slope=0.01

    acc = jnp.dot(silu.astype(matmul_dtype), w_ref[:k, :],
                  preferred_element_type=jnp.float32)
    acc = acc + jnp.dot(lrelu.astype(matmul_dtype), w_ref[k:, :],
                        preferred_element_type=jnp.float32)
    o_ref[...] = acc.astype(o_ref.dtype)


def prepare_kan_weights(base_weight_1, base_weight_2, *, matmul_dtype=None,
                        lane_multiple=128, max_pad_ratio=1.125):
    """Init-time (not per-call) weight preparation.

    Transpose both weights, concatenate along the contraction axis into a
    single (2K, N) slab and cast to the matmul dtype.  Lane-pad N only when
    the padding overhead is small (memory-bound kernel: big write
    amplification costs more than unmasked stores save).
    Returns (w_cat, out_features).
    """
    out_features, in_features = base_weight_1.shape
    assert base_weight_2.shape == (out_features, in_features)
    dtype = matmul_dtype if matmul_dtype is not None else base_weight_1.dtype
    w_cat = jnp.concatenate([base_weight_1.T, base_weight_2.T], axis=0)  # (2K, N)
    w_cat = w_cat.astype(dtype)
    n_pad = _round_up(out_features, lane_multiple)
    # TODO(synk): use lane_multiple=256 on v6e/v7x for compute-bound layers
    # (K, N >= ~512) to fill the 256x256 MXU.
    if n_pad != out_features and n_pad <= max_pad_ratio * out_features:
        w_cat = jnp.pad(w_cat, ((0, 0), (0, n_pad - out_features)))
    return w_cat, out_features


def _choose_batch_tile(batch, sublane, *, block_b=512, min_steps=8):
    """Pick TB: multiple of `sublane`, <= block_b, preferring a divisor of
    `batch` (no pad / no trailing slice) and >= min_steps grid steps
    (4 steps x 2 TensorCores on v7x) when the batch is large enough."""
    target = _round_up(max(1, -(-batch // min_steps)), sublane)
    target = max(sublane, min(block_b, target))
    if batch % sublane == 0:
        tb = target
        while tb >= sublane:
            if batch % tb == 0:
                return tb, batch
            tb -= sublane
    return target, _round_up(batch, target)


def kan_linear_forward(x, w_cat, out_features, *, block_b=512):
    """x: (..., in_features); w_cat: prepared (2*in_features, n_eff) slab."""
    two_k, n_eff = w_cat.shape
    in_features = two_k // 2
    assert x.shape[-1] == in_features
    original_shape = x.shape
    out_dtype = x.dtype

    xf = x.reshape(-1, in_features)
    batch = xf.shape[0]

    # bf16 packs 16 rows per vreg sublane group; f32 packs 8.
    sublane = 16 if x.dtype == jnp.bfloat16 else 8
    tb, b_pad = _choose_batch_tile(batch, sublane, block_b=block_b)
    if b_pad != batch:
        # Rare remainder fallback; padded rows are sliced off below.
        xf = jnp.pad(xf, ((0, b_pad - batch), (0, 0)))

    matmul_dtype = w_cat.dtype
    if x.dtype == jnp.bfloat16 and _supports_bf16_vpu():
        compute_dtype = jnp.bfloat16   # v6e/v7x: native bf16 VPU/EUP
    else:
        compute_dtype = jnp.float32    # v5e (and f32 inputs): f32 elementwise

    # VMEM budget: double-buffered x/out tiles + single-buffered weight slab
    # + headroom; cap at ~75% of physical VMEM (generation-aware).
    x_item = jnp.dtype(x.dtype).itemsize
    o_item = jnp.dtype(out_dtype).itemsize
    w_item = jnp.dtype(matmul_dtype).itemsize
    vmem_bytes = (2 * tb * in_features * x_item
                  + 2 * tb * n_eff * o_item
                  + two_k * n_eff * w_item)
    vmem_cap = int(0.75 * _vmem_capacity_bytes())      # ~48 MiB v7x, ~96 MiB v5e/v6e
    vmem_limit = int(max(16 << 20, min(2 * vmem_bytes + (4 << 20), vmem_cap)))

    kernel = functools.partial(_kan_kernel, k=in_features,
                               matmul_dtype=matmul_dtype,
                               compute_dtype=compute_dtype)

    # TODO(synk): once the resident slab plus two TB-row tiles approaches the
    # VMEM cap (hits ~2x sooner on v7x), add an innermost "arbitrary"
    # K-reduction grid axis with an f32 VMEM scratch accumulator (and/or a
    # "parallel" N axis) instead of keeping the slab fully resident.
    def _run(single_buffer_weights):
        if single_buffer_weights:
            w_spec = pl.BlockSpec((two_k, n_eff), lambda i: (0, 0),
                                  pipeline_mode=pl.Buffered(buffer_count=1))
        else:
            w_spec = pl.BlockSpec((two_k, n_eff), lambda i: (0, 0))
        return pl.pallas_call(
            kernel,
            out_shape=jax.ShapeDtypeStruct((b_pad, n_eff), out_dtype),
            grid=(b_pad // tb,),
            in_specs=[
                pl.BlockSpec((tb, in_features), lambda i: (i, 0)),
                w_spec,
            ],
            out_specs=pl.BlockSpec((tb, n_eff), lambda i: (i, 0)),
            compiler_params=pltpu.CompilerParams(
                # "parallel" lets the batch grid shard across both v7x TCs.
                # TODO(synk): consider pltpu.CORE_PARALLEL explicitly on v7x.
                dimension_semantics=("parallel",),
                vmem_limit_bytes=vmem_limit,
            ),
        )(xf, w_cat)

    try:
        out = _run(True)   # constant slab: single-buffered (saves slab VMEM)
    except Exception:
        out = _run(False)  # older jax without single-buffer support

    if b_pad != batch or n_eff != out_features:
        out = out[:batch, :out_features]
    return out.reshape(*original_shape[:-1], out_features)


def init_kan_params(key, in_features, out_features, scale_base=1.0):
    """Deterministic init mirroring kaiming_uniform_(a=sqrt(5)*scale_base).

    bound = gain * sqrt(3 / fan_in), gain = sqrt(2 / (1 + a^2)).
    Only base_weight_1 / base_weight_2 participate in forward().
    """
    a = math.sqrt(5.0) * scale_base
    gain = math.sqrt(2.0 / (1.0 + a * a))
    bound = gain * math.sqrt(3.0 / in_features)
    k1, k2 = jax.random.split(key)
    w1 = jax.random.uniform(k1, (out_features, in_features),
                            minval=-bound, maxval=bound, dtype=jnp.float32)
    w2 = jax.random.uniform(k2, (out_features, in_features),
                            minval=-bound, maxval=bound, dtype=jnp.float32)
    # TODO(synk): grid / spline_weight / spline_scaler buffers are unused by
    # forward(); they only affect update_grid()/regularization_loss() and are
    # omitted here.
    return w1, w2


def kan_linear_forward_ref(x, w1, w2):
    """Pure-JAX reference for correctness check."""
    in_features = w1.shape[1]
    xf = x.reshape(-1, in_features).astype(jnp.float32)
    silu = xf * jax.nn.sigmoid(xf)
    lrelu = jnp.where(xf >= 0.0, xf, 0.01 * xf)
    out = silu @ w1.T + lrelu @ w2.T
    return out.reshape(*x.shape[:-1], w1.shape[0])


if __name__ == "__main__":
    in_features = 32
    out_features = 16
    key = jax.random.PRNGKey(0)
    kx, kp = jax.random.split(key)

    # Small input consistent with forward(): (..., in_features)
    x = jax.random.normal(kx, (2, 4, in_features), dtype=jnp.float32)
    w1, w2 = init_kan_params(kp, in_features, out_features)

    ref = kan_linear_forward_ref(x, w1, w2)

    # f32 matmul operands.
    w_cat_f32, nf = prepare_kan_weights(w1, w2)
    out = jax.block_until_ready(kan_linear_forward(x, w_cat_f32, nf))
    assert out.shape == (2, 4, out_features), out.shape
    assert jnp.allclose(out, ref, atol=1e-4, rtol=1e-4), "f32 mismatch vs reference"

    # bf16 MXU operands (halves weight matmul traffic); f32 accumulation.
    w_cat_bf16, _ = prepare_kan_weights(w1, w2, matmul_dtype=jnp.bfloat16)
    out_bf16 = jax.block_until_ready(kan_linear_forward(x, w_cat_bf16, nf))
    assert out_bf16.shape == (2, 4, out_features), out_bf16.shape
    assert jnp.allclose(out_bf16, ref, atol=3e-2, rtol=3e-2), "bf16 mismatch vs reference"

    print("KERNEL_OK")
</pallas_src>

<mosaic_0001>
module attributes {stable_mosaic.version = 11 : i64} {
  func.func @_kan_kernel(%arg0: i32, %arg1: memref<8x32xf32, #tpu.memory_space<vmem>>, %arg2: memref<64x16xf32, #tpu.memory_space<vmem>>, %arg3: memref<8x16xf32, #tpu.memory_space<vmem>>) attributes {dimension_semantics = [#tpu.dimension_semantics<parallel>], iteration_bounds = array<i64: 1>, scalar_prefetch = 0 : i64, scratch_operands = 0 : i64, tpu.core_type = #tpu.core_type<tc>, window_params = [{transform_indices = @transform_0, window_bounds = array<i64: 8, 32>}, {pipeline_mode = #tpu.pipeline_mode<synchronous>, transform_indices = @transform_1, window_bounds = array<i64: 64, 16>}, {transform_indices = @transform_2, window_bounds = array<i64: 8, 16>}]} {
    %c0 = arith.constant 0 : index
    %c0_0 = arith.constant 0 : index
    %0 = vector.load %arg1[%c0, %c0_0] : memref<8x32xf32, #tpu.memory_space<vmem>>, vector<8x32xf32>
    %cst = arith.constant 5.000000e-01 : f32
    %1 = vector.broadcast %cst : f32 to vector<8x32xf32>
    %2 = arith.mulf %1, %0 : vector<8x32xf32>
    %cst_1 = arith.constant 5.000000e-01 : f32
    %3 = vector.broadcast %cst_1 : f32 to vector<8x32xf32>
    %4 = arith.mulf %3, %0 : vector<8x32xf32>
    %5 = math.tanh %4 : vector<8x32xf32>
    %cst_2 = arith.constant 1.000000e+00 : f32
    %6 = vector.broadcast %cst_2 : f32 to vector<8x32xf32>
    %7 = arith.addf %6, %5 : vector<8x32xf32>
    %8 = arith.mulf %2, %7 : vector<8x32xf32>
    %cst_3 = arith.constant 0.000000e+00 : f32
    %9 = vector.broadcast %cst_3 : f32 to vector<8x32xf32>
    %10 = arith.cmpf oge, %0, %9 : vector<8x32xf32>
    %cst_4 = arith.constant 0.00999999977 : f32
    %11 = vector.broadcast %cst_4 : f32 to vector<8x32xf32>
    %12 = arith.mulf %11, %0 : vector<8x32xf32>
    %13 = arith.select %10, %0, %12 : vector<8x32xi1>, vector<8x32xf32>
    %c0_5 = arith.constant 0 : index
    %c0_6 = arith.constant 0 : index
    %14 = vector.load %arg2[%c0_5, %c0_6] : memref<64x16xf32, #tpu.memory_space<vmem>>, vector<32x16xf32>
    %cst_7 = arith.constant dense<0.000000e+00> : vector<8x16xf32>
    %15 = tpu.matmul %8, %14, %cst_7 {dimension_numbers = #tpu.dot_dimension_numbers<[1], [0], [0], [1], [0, 0, 1, 1], [], []>} : vector<8x32xf32>, vector<32x16xf32>, vector<8x16xf32> -> vector<8x16xf32>
    %c32 = arith.constant 32 : index
    %c0_8 = arith.constant 0 : index
    %16 = vector.load %arg2[%c32, %c0_8] : memref<64x16xf32, #tpu.memory_space<vmem>>, vector<32x16xf32>
    %cst_9 = arith.constant dense<0.000000e+00> : vector<8x16xf32>
    %17 = tpu.matmul %13, %16, %cst_9 {dimension_numbers = #tpu.dot_dimension_numbers<[1], [0], [0], [1], [0, 0, 1, 1], [], []>} : vector<8x32xf32>, vector<32x16xf32>, vector<8x16xf32> -> vector<8x16xf32>
    %18 = arith.addf %15, %17 : vector<8x16xf32>
    %c0_10 = arith.constant 0 : index
    %c0_11 = arith.constant 0 : index
    %19 = vector.load %arg3[%c0_10, %c0_11] : memref<8x16xf32, #tpu.memory_space<vmem>>, vector<8x16xf32>
    tpu.vector_store %arg3[%c0_10, %c0_11], %18 {strides = array<i32>} : memref<8x16xf32, #tpu.memory_space<vmem>>, vector<8x16xf32>,
    return
  }
  func.func @transform_0(%arg0: i32) -> (i32, i32) {
    %c0_i32 = arith.constant 0 : i32
    %c0_i32_0 = arith.constant 0 : i32
    return %arg0, %c0_i32 : i32, i32
  }
  func.func @transform_1(%arg0: i32) -> (i32, i32) {
    %c0_i32 = arith.constant 0 : i32
    %c0_i32_0 = arith.constant 0 : i32
    %c0_i32_1 = arith.constant 0 : i32
    return %c0_i32, %c0_i32_0 : i32, i32
  }
  func.func @transform_2(%arg0: i32) -> (i32, i32) {
    %c0_i32 = arith.constant 0 : i32
    %c0_i32_0 = arith.constant 0 : i32
    return %arg0, %c0_i32 : i32, i32
  }
}

module attributes {stable_mosaic.version = 11 : i64} {
  func.func @_kan_kernel(%arg0: i32, %arg1: memref<8x32xf32, #tpu.memory_space<vmem>>, %arg2: memref<64x16xf32, #tpu.memory_space<vmem>>, %arg3: memref<8x16xf32, #tpu.memory_space<vmem>>) attributes {dimension_semantics = [#tpu.dimension_semantics<parallel>], iteration_bounds = array<i64: 1>, scalar_prefetch = 0 : i64, scratch_operands = 0 : i64, tpu.core_type = #tpu.core_type<tc>, window_params = [{transform_indices = @transform_0, window_bounds = array<i64: 8, 32>}, {pipeline_mode = #tpu.pipeline_mode<synchronous>, transform_indices = @transform_1, window_bounds = array<i64: 64, 16>}, {transform_indices = @transform_2, window_bounds = array<i64: 8, 16>}]} {
    %c0 = arith.constant 0 : index
    %c0_0 = arith.constant 0 : index
    %0 = vector.load %arg1[%c0, %c0_0] : memref<8x32xf32, #tpu.memory_space<vmem>>, vector<8x32xf32>
    %cst = arith.constant 5.000000e-01 : f32
    %1 = vector.broadcast %cst : f32 to vector<8x32xf32>
    %2 = arith.mulf %1, %0 : vector<8x32xf32>
    %cst_1 = arith.constant 5.000000e-01 : f32
    %3 = vector.broadcast %cst_1 : f32 to vector<8x32xf32>
    %4 = arith.mulf %3, %0 : vector<8x32xf32>
    %5 = math.tanh %4 : vector<8x32xf32>
    %cst_2 = arith.constant 1.000000e+00 : f32
    %6 = vector.broadcast %cst_2 : f32 to vector<8x32xf32>
    %7 = arith.addf %6, %5 : vector<8x32xf32>
    %8 = arith.mulf %2, %7 : vector<8x32xf32>
    %cst_3 = arith.constant 0.000000e+00 : f32
    %9 = vector.broadcast %cst_3 : f32 to vector<8x32xf32>
    %10 = arith.cmpf oge, %0, %9 : vector<8x32xf32>
    %cst_4 = arith.constant 0.00999999977 : f32
    %11 = vector.broadcast %cst_4 : f32 to vector<8x32xf32>
    %12 = arith.mulf %11, %0 : vector<8x32xf32>
    %13 = arith.select %10, %0, %12 : vector<8x32xi1>, vector<8x32xf32>
    %c0_5 = arith.constant 0 : index
    %c0_6 = arith.constant 0 : index
    %14 = vector.load %arg2[%c0_5, %c0_6] : memref<64x16xf32, #tpu.memory_space<vmem>>, vector<32x16xf32>
    %cst_7 = arith.constant dense<0.000000e+00> : vector<8x16xf32>
    %15 = tpu.matmul %8, %14, %cst_7 {dimension_numbers = #tpu.dot_dimension_numbers<[1], [0], [0], [1], [0, 0, 1, 1], [], []>} : vector<8x32xf32>, vector<32x16xf32>, vector<8x16xf32> -> vector<8x16xf32>
    %c32 = arith.constant 32 : index
    %c0_8 = arith.constant 0 : index
    %16 = vector.load %arg2[%c32, %c0_8] : memref<64x16xf32, #tpu.memory_space<vmem>>, vector<32x16xf32>
    %cst_9 = arith.constant dense<0.000000e+00> : vector<8x16xf32>
    %17 = tpu.matmul %13, %16, %cst_9 {dimension_numbers = #tpu.dot_dimension_numbers<[1], [0], [0], [1], [0, 0, 1, 1], [], []>} : vector<8x32xf32>, vector<32x16xf32>, vector<8x16xf32> -> vector<8x16xf32>
    %18 = arith.addf %15, %17 : vector<8x16xf32>
    %c0_10 = arith.constant 0 : index
    %c0_11 = arith.constant 0 : index
    %19 = vector.load %arg3[%c0_10, %c0_11] : memref<8x16xf32, #tpu.memory_space<vmem>>, vector<8x16xf32>
    tpu.vector_store %arg3[%c0_10, %c0_11], %18 {strides = array<i32>} : memref<8x16xf32, #tpu.memory_space<vmem>>, vector<8x16xf32>,
    return
  }
  func.func @transform_0(%arg0: i32) -> (i32, i32) {
    %c0_i32 = arith.constant 0 : i32
    %c0_i32_0 = arith.constant 0 : i32
    return %arg0, %c0_i32 : i32, i32
  }
  func.func @transform_1(%arg0: i32) -> (i32, i32) {
    %c0_i32 = arith.constant 0 : i32
    %c0_i32_0 = arith.constant 0 : i32
    %c0_i32_1 = arith.constant 0 : i32
    return %c0_i32, %c0_i32_0 : i32, i32
  }
  func.func @transform_2(%arg0: i32) -> (i32, i32) {
    %c0_i32 = arith.constant 0 : i32
    %c0_i32_0 = arith.constant 0 : i32
    return %arg0, %c0_i32 : i32, i32
  }
}

</mosaic_0001>

<llo_original>
// kernel: tpu_custom_call.1
$region0: #{tpu_custom_call.1}
  #allocation0 [shape = 'u32[]', space=smem, size = 0x4, offset = 0x4, fixed_abs, tag = 'smem constant byte address 0x4 - core index']
  #allocation1 [shape = 'u32[144,128]{1,0:T(1,128)}', space=vmem, size = 0x12000, scoped, tag = 'internal scratch']
  %s0 = inlined_call_operand.vmem [shape: f32[8,32], index: 0, kind: input, shape index: {}]
  %s1 = inlined_call_operand.vmem [shape: f32[64,16], index: 1, kind: input, shape index: {}]
  %s2 = inlined_call_operand.hbm [shape: f32[8,16], index: 2, kind: output, shape index: {}]
  %s3 = sld [smem:[#allocation0]]
  $region18: #{tpu_custom_call.1} parent=0
    _
  %s5 = ssub.s32 1, %s3
  %s6 = scalar_select 0, %s5, %s3
  $region1: #{tpu_custom_call.1} parent=0
    #allocation2 [shape = 'u8[4096]{0}', space=vmem, size = 0x1000, scoped, tag = 'output window, operand 0, single buffered']
    #allocation3 [shape = 's32[1]{0}', space=sflag, size = 0x4, scoped, tag = 'scoped memory for tpu_custom_call.1']
    %7 = vsyncpa [#allocation3], 0
    // Predicated region
    $region2: #{tpu_custom_call.1} parent=1 // pred_check
      _
    $region3: #{tpu_custom_call.1} parent=1 // pred_check_branch
      %9 = sbr.rel (0) target = $region5
    $region4: #{tpu_custom_call.1} parent=1 // pred_region
      _
    $region5: #{tpu_custom_call.1} parent=1 // pred_fallthru
      _
    // Predicated region
    $region6: #{tpu_custom_call.1} parent=1 // pred_check
      _
    $region7: #{tpu_custom_call.1} parent=1 // pred_check_branch
      %11 = sbr.rel (0) target = $region9
    $region8: #{tpu_custom_call.1} parent=1 // pred_region
      _
    $region9: #{tpu_custom_call.1} parent=1 // pred_fallthru
      _
    %v12 = vld [vmem:[%s0] sm:$0xff]
    %v13 = vmul.f32 %v12, 0.5
    %v14 = vtanh.pop %v13
    %v15 = vadd.f32 %v14, 1.0
    %v16 = vmul.f32 %v13, %v15
    %vm17 = vcmp.ge.f32.partialorder %v12, 0.0
    %v18 = vmul.f32 %v12, 0.01
    %v19 = vsel %vm17, %v12, %v18
    %v20 = vld [vmem:[%s1] sm:$0xff]
    %v21 = vld [vmem:[%s1 + $0x8] sm:$0xff]
    %v22 = vld [vmem:[%s1 + $0x10] sm:$0xff]
    %v23 = vld [vmem:[%s1 + $0x18] sm:$0xff]
    %v24 = vld [vmem:[%s1 + $0x20] sm:$0xff]
    %v25 = vld [vmem:[%s1 + $0x28] sm:$0xff]
    %v26 = vld [vmem:[%s1 + $0x30] sm:$0xff]
    %v27 = vld [vmem:[%s1 + $0x38] sm:$0xff]
    %vm28 = vcmask 261120
    %v30 = vsel %vm28, %v19, 0
    %32 = vmatprep.subr.mxu0 0.0
    %33 = vmatpush1.msra.mxu0 %v24
    %34 = vmatprep.subr.mxu0 0.0
    %35 = vmatpush1.msra.mxu0 %v25
    %36 = vmatprep.subr.mxu0 0.0
    %37 = vmatpush1.msra.mxu0 %v26
    %38 = vmatprep.subr.mxu0 0.0
    %39 = vmatpush1.msra.mxu0 %v27
    %40 = vmatprep.subr.mxu0 0.0
    %41 = vmatpush1.msra.mxu0 0.0
    %42 = vmatprep.subr.mxu0 0.0
    %43 = vmatpush1.msra.mxu0 0.0
    %44 = vmatprep.subr.mxu0 0.0
    %45 = vmatpush1.msra.mxu0 0.0
    %46 = vmatprep.subr.mxu0 0.0
    %47 = vmatpush1.msra.mxu0 0.0
    %48 = vmatprep.subr.mxu0 0.0
    %49 = vmatpush1.msra.mxu0 0.0
    %50 = vmatprep.subr.mxu0 0.0
    %51 = vmatpush1.msra.mxu0 0.0
    %52 = vmatprep.subr.mxu0 0.0
    %53 = vmatpush1.msra.mxu0 0.0
    %54 = vmatprep.subr.mxu0 0.0
    %55 = vmatpush1.msra.mxu0 0.0
    %56 = vmatprep.subr.mxu0 0.0
    %57 = vmatpush1.msra.mxu0 0.0
    %58 = vmatprep.subr.mxu0 0.0
    %59 = vmatpush1.msra.mxu0 0.0
    %60 = vmatprep.subr.mxu0 0.0
    %61 = vmatpush1.msra.mxu0 0.0
    %62 = vmatprep.subr.mxu0 0.0
    %63 = vmatpush1.msra.mxu0 0.0
    %64 = vmatprep.subr.mxu0 0.0
    %65 = vmatpush1.msra.mxu0 0.0
    %66 = vmatprep.subr.mxu0 0.0
    %67 = vmatpush1.msra.mxu0 0.0
    %68 = vmatprep.subr.mxu0 0.0
    %69 = vmatpush1.msra.mxu0 0.0
    %70 = vmatprep.subr.mxu0 0.0
    %71 = vmatpush1.msra.mxu0 0.0
    %72 = vmatprep.subr.mxu0 0.0
    %73 = vmatpush1.msra.mxu0 0.0
    %74 = vmatprep.subr.mxu0 0.0
    %75 = vmatpush1.msra.mxu0 0.0
    %76 = vmatprep.subr.mxu0 0.0
    %77 = vmatpush1.msra.mxu0 0.0
    %78 = vmatprep.subr.mxu0 0.0
    %79 = vmatpush1.msra.mxu0 0.0
    %80 = vmatprep.subr.mxu0 0.0
    %81 = vmatpush1.msra.mxu0 0.0
    %82 = vmatprep.subr.mxu0 0.0
    %83 = vmatpush1.msra.mxu0 0.0
    %84 = vmatprep.subr.mxu0 0.0
    %85 = vmatpush1.msra.mxu0 0.0
    %86 = vmatprep.subr.mxu0 0.0
    %87 = vmatpush1.msra.mxu0 0.0
    %88 = vmatprep.subr.mxu0 0.0
    %89 = vmatpush1.msra.mxu0 0.0
    %90 = vmatprep.subr.mxu0 0.0
    %91 = vmatpush1.msra.mxu0 0.0
    %92 = vmatprep.subr.mxu0 0.0
    %93 = vmatpush1.msra.mxu0 0.0
    %94 = vmatprep.subr.mxu0 0.0
    %95 = vmatpush1.msra.mxu0 0.0
    %96 = vmatprep.mubr.f32.mxu0 0.0
    %97 = vmatmul.mubr.f32.gmra.mrb[0].mxu0 %v30
    %v98 = vpop.f32.mrb[0].mxu0
    %v99 = vadd.f32 0.0, %v98
    %v100 = vpop.f32.mrb[0].mxu0
    %101 = vdwg.mxu0
    %v103 = vsel %vm28, %v16, 0
    %105 = vmatprep.subr.mxu0 0.0
    %106 = vmatpush1.msra.mxu0 %v20
    %107 = vmatprep.subr.mxu0 0.0
    %108 = vmatpush1.msra.mxu0 %v21
    %109 = vmatprep.subr.mxu0 0.0
    %110 = vmatpush1.msra.mxu0 %v22
    %111 = vmatprep.subr.mxu0 0.0
    %112 = vmatpush1.msra.mxu0 %v23
    %113 = vmatprep.subr.mxu0 0.0
    %114 = vmatpush1.msra.mxu0 0.0
    %115 = vmatprep.subr.mxu0 0.0
    %116 = vmatpush1.msra.mxu0 0.0
    %117 = vmatprep.subr.mxu0 0.0
    %118 = vmatpush1.msra.mxu0 0.0
    %119 = vmatprep.subr.mxu0 0.0
    %120 = vmatpush1.msra.mxu0 0.0
    %121 = vmatprep.subr.mxu0 0.0
    %122 = vmatpush1.msra.mxu0 0.0
    %123 = vmatprep.subr.mxu0 0.0
    %124 = vmatpush1.msra.mxu0 0.0
    %125 = vmatprep.subr.mxu0 0.0
    %126 = vmatpush1.msra.mxu0 0.0
    %127 = vmatprep.subr.mxu0 0.0
    %128 = vmatpush1.msra.mxu0 0.0
    %129 = vmatprep.subr.mxu0 0.0
    %130 = vmatpush1.msra.mxu0 0.0
    %131 = vmatprep.subr.mxu0 0.0
    %132 = vmatpush1.msra.mxu0 0.0
    %133 = vmatprep.subr.mxu0 0.0
    %134 = vmatpush1.msra.mxu0 0.0
    %135 = vmatprep.subr.mxu0 0.0
    %136 = vmatpush1.msra.mxu0 0.0
    %137 = vmatprep.subr.mxu0 0.0
    %138 = vmatpush1.msra.mxu0 0.0
    %139 = vmatprep.subr.mxu0 0.0
    %140 = vmatpush1.msra.mxu0 0.0
    %141 = vmatprep.subr.mxu0 0.0
    %142 = vmatpush1.msra.mxu0 0.0
    %143 = vmatprep.subr.mxu0 0.0
    %144 = vmatpush1.msra.mxu0 0.0
    %145 = vmatprep.subr.mxu0 0.0
    %146 = vmatpush1.msra.mxu0 0.0
    %147 = vmatprep.subr.mxu0 0.0
    %148 = vmatpush1.msra.mxu0 0.0
    %149 = vmatprep.subr.mxu0 0.0
    %150 = vmatpush1.msra.mxu0 0.0
    %151 = vmatprep.subr.mxu0 0.0
    %152 = vmatpush1.msra.mxu0 0.0
    %153 = vmatprep.subr.mxu0 0.0
    %154 = vmatpush1.msra.mxu0 0.0
    %155 = vmatprep.subr.mxu0 0.0
    %156 = vmatpush1.msra.mxu0 0.0
    %157 = vmatprep.subr.mxu0 0.0
    %158 = vmatpush1.msra.mxu0 0.0
    %159 = vmatprep.subr.mxu0 0.0
    %160 = vmatpush1.msra.mxu0 0.0
    %161 = vmatprep.subr.mxu0 0.0
    %162 = vmatpush1.msra.mxu0 0.0
    %163 = vmatprep.subr.mxu0 0.0
    %164 = vmatpush1.msra.mxu0 0.0
    %165 = vmatprep.subr.mxu0 0.0
    %166 = vmatpush1.msra.mxu0 0.0
    %167 = vmatprep.subr.mxu0 0.0
    %168 = vmatpush1.msra.mxu0 0.0
    %169 = vmatprep.mubr.f32.mxu0 0.0
    %170 = vmatmul.mubr.f32.gmra.mrb[0].mxu0 %v103
    %v171 = vpop.f32.mrb[0].mxu0
    %v172 = vadd.f32 %v99, %v171
    %v173 = vpop.f32.mrb[0].mxu0
    %174 = vdwg.mxu0
    %vm175 = vcmask 130048
    %176 = vst.msk [vmem:[#allocation2] sm:$0xff] %vm175, %v172
    // Predicated region
    $region10: #{tpu_custom_call.1} parent=1 // pred_check
      _
    $region11: #{tpu_custom_call.1} parent=1 // pred_check_branch
      %178 = sbr.rel (0) target = $region13
    $region12: #{tpu_custom_call.1} parent=1 // pred_region
      %s180 = ssub.s32 128, 128
      %181 = vsyncadd [#allocation3], %s180
      %s183 = sshll.u32 [#allocation2], 4
      %s184 = int_to_ptr.vmem [resolvable:$true] %s183
      %186 = dma.vmem_to_hbm [thread:$0]  %s184, 128, %s2, [#allocation3]
    $region13: #{tpu_custom_call.1} parent=1 // pred_fallthru
      _
    // Predicated region
    $region14: #{tpu_custom_call.1} parent=1 // pred_check
      _
    $region15: #{tpu_custom_call.1} parent=1 // pred_check_branch
      %188 = sbr.rel (0) target = $region17
    $region16: #{tpu_custom_call.1} parent=1 // pred_region
      %189 = dma.done [#allocation3], 128
    $region17: #{tpu_custom_call.1} parent=1 // pred_fallthru
      _
    %190 = vsyncpa [#allocation3], 1

// kernel: tpu_custom_call.1
$region0: #{tpu_custom_call.1}
  #allocation0 [shape = 'u32[]', space=smem, size = 0x4, offset = 0x4, fixed_abs, tag = 'smem constant byte address 0x4 - core index']
  #allocation1 [shape = 'u32[144,128]{1,0:T(1,128)}', space=vmem, size = 0x12000, scoped, tag = 'internal scratch']
  %s0 = inlined_call_operand.vmem [shape: f32[8,32], index: 0, kind: input, shape index: {}]
  %s1 = inlined_call_operand.vmem [shape: f32[64,16], index: 1, kind: input, shape index: {}]
  %s2 = inlined_call_operand.hbm [shape: f32[8,16], index: 2, kind: output, shape index: {}]
  %s3 = sld [smem:[#allocation0]]
  $region18: #{tpu_custom_call.1} parent=0
    _
  %s5 = ssub.s32 1, %s3
  %s6 = scalar_select 0, %s5, %s3
  $region1: #{tpu_custom_call.1} parent=0
    #allocation2 [shape = 'u8[4096]{0}', space=vmem, size = 0x1000, scoped, tag = 'output window, operand 0, single buffered']
    #allocation3 [shape = 's32[1]{0}', space=sflag, size = 0x4, scoped, tag = 'scoped memory for tpu_custom_call.1']
    %7 = vsyncpa [#allocation3], 0
    // Predicated region
    $region2: #{tpu_custom_call.1} parent=1 // pred_check
      _
    $region3: #{tpu_custom_call.1} parent=1 // pred_check_branch
      %9 = sbr.rel (0) target = $region5
    $region4: #{tpu_custom_call.1} parent=1 // pred_region
      _
    $region5: #{tpu_custom_call.1} parent=1 // pred_fallthru
      _
    // Predicated region
    $region6: #{tpu_custom_call.1} parent=1 // pred_check
      _
    $region7: #{tpu_custom_call.1} parent=1 // pred_check_branch
      %11 = sbr.rel (0) target = $region9
    $region8: #{tpu_custom_call.1} parent=1 // pred_region
      _
    $region9: #{tpu_custom_call.1} parent=1 // pred_fallthru
      _
    %v12 = vld [vmem:[%s0] sm:$0xff]
    %v13 = vmul.f32 %v12, 0.5
    %v14 = vtanh.pop %v13
    %v15 = vadd.f32 %v14, 1.0
    %v16 = vmul.f32 %v13, %v15
    %vm17 = vcmp.ge.f32.partialorder %v12, 0.0
    %v18 = vmul.f32 %v12, 0.01
    %v19 = vsel %vm17, %v12, %v18
    %v20 = vld [vmem:[%s1] sm:$0xff]
    %v21 = vld [vmem:[%s1 + $0x8] sm:$0xff]
    %v22 = vld [vmem:[%s1 + $0x10] sm:$0xff]
    %v23 = vld [vmem:[%s1 + $0x18] sm:$0xff]
    %v24 = vld [vmem:[%s1 + $0x20] sm:$0xff]
    %v25 = vld [vmem:[%s1 + $0x28] sm:$0xff]
    %v26 = vld [vmem:[%s1 + $0x30] sm:$0xff]
    %v27 = vld [vmem:[%s1 + $0x38] sm:$0xff]
    %vm28 = vcmask 261120
    %v30 = vsel %vm28, %v19, 0
    %32 = vmatprep.subr.mxu0 0.0
    %33 = vmatpush1.msra.mxu0 %v24
    %34 = vmatprep.subr.mxu0 0.0
    %35 = vmatpush1.msra.mxu0 %v25
    %36 = vmatprep.subr.mxu0 0.0
    %37 = vmatpush1.msra.mxu0 %v26
    %38 = vmatprep.subr.mxu0 0.0
    %39 = vmatpush1.msra.mxu0 %v27
    %40 = vmatprep.subr.mxu0 0.0
    %41 = vmatpush1.msra.mxu0 0.0
    %42 = vmatprep.subr.mxu0 0.0
    %43 = vmatpush1.msra.mxu0 0.0
    %44 = vmatprep.subr.mxu0 0.0
    %45 = vmatpush1.msra.mxu0 0.0
    %46 = vmatprep.subr.mxu0 0.0
    %47 = vmatpush1.msra.mxu0 0.0
    %48 = vmatprep.subr.mxu0 0.0
    %49 = vmatpush1.msra.mxu0 0.0
    %50 = vmatprep.subr.mxu0 0.0
    %51 = vmatpush1.msra.mxu0 0.0
    %52 = vmatprep.subr.mxu0 0.0
    %53 = vmatpush1.msra.mxu0 0.0
    %54 = vmatprep.subr.mxu0 0.0
    %55 = vmatpush1.msra.mxu0 0.0
    %56 = vmatprep.subr.mxu0 0.0
    %57 = vmatpush1.msra.mxu0 0.0
    %58 = vmatprep.subr.mxu0 0.0
    %59 = vmatpush1.msra.mxu0 0.0
    %60 = vmatprep.subr.mxu0 0.0
    %61 = vmatpush1.msra.mxu0 0.0
    %62 = vmatprep.subr.mxu0 0.0
    %63 = vmatpush1.msra.mxu0 0.0
    %64 = vmatprep.subr.mxu0 0.0
    %65 = vmatpush1.msra.mxu0 0.0
    %66 = vmatprep.subr.mxu0 0.0
    %67 = vmatpush1.msra.mxu0 0.0
    %68 = vmatprep.subr.mxu0 0.0
    %69 = vmatpush1.msra.mxu0 0.0
    %70 = vmatprep.subr.mxu0 0.0
    %71 = vmatpush1.msra.mxu0 0.0
    %72 = vmatprep.subr.mxu0 0.0
    %73 = vmatpush1.msra.mxu0 0.0
    %74 = vmatprep.subr.mxu0 0.0
    %75 = vmatpush1.msra.mxu0 0.0
    %76 = vmatprep.subr.mxu0 0.0
    %77 = vmatpush1.msra.mxu0 0.0
    %78 = vmatprep.subr.mxu0 0.0
    %79 = vmatpush1.msra.mxu0 0.0
    %80 = vmatprep.subr.mxu0 0.0
    %81 = vmatpush1.msra.mxu0 0.0
    %82 = vmatprep.subr.mxu0 0.0
    %83 = vmatpush1.msra.mxu0 0.0
    %84 = vmatprep.subr.mxu0 0.0
    %85 = vmatpush1.msra.mxu0 0.0
    %86 = vmatprep.subr.mxu0 0.0
    %87 = vmatpush1.msra.mxu0 0.0
    %88 = vmatprep.subr.mxu0 0.0
    %89 = vmatpush1.msra.mxu0 0.0
    %90 = vmatprep.subr.mxu0 0.0
    %91 = vmatpush1.msra.mxu0 0.0
    %92 = vmatprep.subr.mxu0 0.0
    %93 = vmatpush1.msra.mxu0 0.0
    %94 = vmatprep.subr.mxu0 0.0
    %95 = vmatpush1.msra.mxu0 0.0
    %96 = vmatprep.mubr.f32.mxu0 0.0
    %97 = vmatmul.mubr.f32.gmra.mrb[0].mxu0 %v30
    %v98 = vpop.f32.mrb[0].mxu0
    %v99 = vadd.f32 0.0, %v98
    %v100 = vpop.f32.mrb[0].mxu0
    %101 = vdwg.mxu0
    %v103 = vsel %vm28, %v16, 0
    %105 = vmatprep.subr.mxu0 0.0
    %106 = vmatpush1.msra.mxu0 %v20
    %107 = vmatprep.subr.mxu0 0.0
    %108 = vmatpush1.msra.mxu0 %v21
    %109 = vmatprep.subr.mxu0 0.0
    %110 = vmatpush1.msra.mxu0 %v22
    %111 = vmatprep.subr.mxu0 0.0
    %112 = vmatpush1.msra.mxu0 %v23
    %113 = vmatprep.subr.mxu0 0.0
    %114 = vmatpush1.msra.mxu0 0.0
    %115 = vmatprep.subr.mxu0 0.0
    %116 = vmatpush1.msra.mxu0 0.0
    %117 = vmatprep.subr.mxu0 0.0
    %118 = vmatpush1.msra.mxu0 0.0
    %119 = vmatprep.subr.mxu0 0.0
    %120 = vmatpush1.msra.mxu0 0.0
    %121 = vmatprep.subr.mxu0 0.0
    %122 = vmatpush1.msra.mxu0 0.0
    %123 = vmatprep.subr.mxu0 0.0
    %124 = vmatpush1.msra.mxu0 0.0
    %125 = vmatprep.subr.mxu0 0.0
    %126 = vmatpush1.msra.mxu0 0.0
    %127 = vmatprep.subr.mxu0 0.0
    %128 = vmatpush1.msra.mxu0 0.0
    %129 = vmatprep.subr.mxu0 0.0
    %130 = vmatpush1.msra.mxu0 0.0
    %131 = vmatprep.subr.mxu0 0.0
    %132 = vmatpush1.msra.mxu0 0.0
    %133 = vmatprep.subr.mxu0 0.0
    %134 = vmatpush1.msra.mxu0 0.0
    %135 = vmatprep.subr.mxu0 0.0
    %136 = vmatpush1.msra.mxu0 0.0
    %137 = vmatprep.subr.mxu0 0.0
    %138 = vmatpush1.msra.mxu0 0.0
    %139 = vmatprep.subr.mxu0 0.0
    %140 = vmatpush1.msra.mxu0 0.0
    %141 = vmatprep.subr.mxu0 0.0
    %142 = vmatpush1.msra.mxu0 0.0
    %143 = vmatprep.subr.mxu0 0.0
    %144 = vmatpush1.msra.mxu0 0.0
    %145 = vmatprep.subr.mxu0 0.0
    %146 = vmatpush1.msra.mxu0 0.0
    %147 = vmatprep.subr.mxu0 0.0
    %148 = vmatpush1.msra.mxu0 0.0
    %149 = vmatprep.subr.mxu0 0.0
    %150 = vmatpush1.msra.mxu0 0.0
    %151 = vmatprep.subr.mxu0 0.0
    %152 = vmatpush1.msra.mxu0 0.0
    %153 = vmatprep.subr.mxu0 0.0
    %154 = vmatpush1.msra.mxu0 0.0
    %155 = vmatprep.subr.mxu0 0.0
    %156 = vmatpush1.msra.mxu0 0.0
    %157 = vmatprep.subr.mxu0 0.0
    %158 = vmatpush1.msra.mxu0 0.0
    %159 = vmatprep.subr.mxu0 0.0
    %160 = vmatpush1.msra.mxu0 0.0
    %161 = vmatprep.subr.mxu0 0.0
    %162 = vmatpush1.msra.mxu0 0.0
    %163 = vmatprep.subr.mxu0 0.0
    %164 = vmatpush1.msra.mxu0 0.0
    %165 = vmatprep.subr.mxu0 0.0
    %166 = vmatpush1.msra.mxu0 0.0
    %167 = vmatprep.subr.mxu0 0.0
    %168 = vmatpush1.msra.mxu0 0.0
    %169 = vmatprep.mubr.f32.mxu0 0.0
    %170 = vmatmul.mubr.f32.gmra.mrb[0].mxu0 %v103
    %v171 = vpop.f32.mrb[0].mxu0
    %v172 = vadd.f32 %v99, %v171
    %v173 = vpop.f32.mrb[0].mxu0
    %174 = vdwg.mxu0
    %vm175 = vcmask 130048
    %176 = vst.msk [vmem:[#allocation2] sm:$0xff] %vm175, %v172
    // Predicated region
    $region10: #{tpu_custom_call.1} parent=1 // pred_check
      _
    $region11: #{tpu_custom_call.1} parent=1 // pred_check_branch
      %178 = sbr.rel (0) target = $region13
    $region12: #{tpu_custom_call.1} parent=1 // pred_region
      %s180 = ssub.s32 128, 128
      %181 = vsyncadd [#allocation3], %s180
      %s183 = sshll.u32 [#allocation2], 4
      %s184 = int_to_ptr.vmem [resolvable:$true] %s183
      %186 = dma.vmem_to_hbm [thread:$0]  %s184, 128, %s2, [#allocation3]
    $region13: #{tpu_custom_call.1} parent=1 // pred_fallthru
      _
    // Predicated region
    $region14: #{tpu_custom_call.1} parent=1 // pred_check
      _
    $region15: #{tpu_custom_call.1} parent=1 // pred_check_branch
      %188 = sbr.rel (0) target = $region17
    $region16: #{tpu_custom_call.1} parent=1 // pred_region
      %189 = dma.done [#allocation3], 128
    $region17: #{tpu_custom_call.1} parent=1 // pred_fallthru
      _
    %190 = vsyncpa [#allocation3], 1

</llo_original>
